<compile_context>
chip_gen: v5e
topology: v5e:2x2
jax: 0.10.0
libtpu: 0.0.40
codegen_flags: <defaults>
</compile_context>

<pallas_src>
import functools

import jax
import jax.numpy as jnp
from jax.experimental import pallas as pl
from jax.experimental.pallas import tpu as pltpu


def _round_up(x, m):
    return ((x + m - 1) // m) * m


# ----------------------------------------------------------------------------
# Fused kernel: one grid step = b_tile batch elements, all conv layers + concats.
#   refs = (word_ref, char_ref, w0, b0, ..., w_{L-1}, b_{L-1}, o_ref, act_a, act_b)
# ----------------------------------------------------------------------------
def _fused_encoder_kernel(*refs, n_layers, seq_len, ksize, pad, row0,
                          c0, c_outs, b_tile):
    T = seq_len
    word_ref, char_ref = refs[0], refs[1]
    wb_refs = refs[2:2 + 2 * n_layers]
    o_ref = refs[2 + 2 * n_layers]
    act_a = refs[3 + 2 * n_layers]
    act_b = refs[4 + 2 * n_layers]

    # Zero the activation slabs (this also zero-fills the conv halo rows, which
    # are never written again inside this grid step).
    act_a[...] = jnp.zeros_like(act_a)
    if n_layers > 1:
        act_b[...] = jnp.zeros_like(act_b)

    # Fused input concat: embedded = [word_embedding, char_embedding] on lanes.
    emb = jnp.concatenate([word_ref[...], char_ref[...]], axis=-1)  # (b, T, c0)

    # Seed the first activation slab; interior starts at the 8-aligned row0.
    act_a[:, row0:row0 + T, 0:c0] = emb

    cur, nxt = act_a, act_b
    c_in = c0
    y = None
    for li in range(n_layers):
        w_ref = wb_refs[2 * li]        # (K * c_in, c_out), k-major / c_in-minor
        b_ref = wb_refs[2 * li + 1]    # (1, c_out)
        c_out = c_outs[li]

        # im2col: K shifted (b, T, c_in) windows -> one (b*T, K*c_in) operand,
        # so the whole layer is a single deep MXU matmul instead of K shallow ones.
        cols = [cur[:, row0 - pad + k: row0 - pad + k + T, 0:c_in]
                for k in range(ksize)]
        patch = jnp.concatenate(cols, axis=-1).reshape(b_tile * T, ksize * c_in)

        y = jnp.dot(patch, w_ref[...], preferred_element_type=jnp.float32)
        y = jnp.maximum(y + b_ref[...], 0.0)                 # bias + ReLU
        y = y.reshape(b_tile, T, c_out)

        if li < n_layers - 1:
            nxt[:, row0:row0 + T, 0:c_out] = y               # stays in VMEM
            cur, nxt = nxt, cur
            c_in = c_out

    # Fused output concat: single lane-dense store of [conv_out, embedded].
    o_ref[...] = jnp.concatenate([y, emb], axis=-1).astype(o_ref.dtype)


# ----------------------------------------------------------------------------
# Wrapper: builds specs, tiles the batch, reshapes weights for im2col.
# ----------------------------------------------------------------------------
def fused_word_encoder(word_emb, char_emb, conv_layers, *, b_tile=None,
                       target_rows=512):
    B, T, Dw = word_emb.shape
    Bc, Tc, Dc = char_emb.shape
    assert (Bc, Tc) == (B, T)
    n_layers = len(conv_layers)
    assert n_layers >= 1
    c0 = Dw + Dc

    K = conv_layers[0][0].shape[0]
    assert K % 2 == 1, "even kernel_size changes output length in PyTorch Conv1d"
    pad = K // 2

    c_outs = []
    c_in = c0
    for (w, b) in conv_layers:
        kk, wc_in, wc_out = w.shape
        assert kk == K and wc_in == c_in and b.shape == (wc_out,)
        c_outs.append(wc_out)
        c_in = wc_out
    c_last = c_outs[-1]
    c_max = max([c0] + c_outs)
    out_ch = c_last + c0

    # Batch tiling: pack ~target_rows sublane rows of work per grid step.
    if b_tile is None:
        b_tile = max(1, target_rows // max(T, 1))
    b_tile = max(1, min(b_tile, B))
    B_pad = _round_up(B, b_tile)
    if B_pad != B:
        word_emb = jnp.pad(word_emb, ((0, B_pad - B), (0, 0), (0, 0)))
        char_emb = jnp.pad(char_emb, ((0, B_pad - B), (0, 0), (0, 0)))

    # Activation slab: zero halo rows around an 8-aligned interior.
    row0 = _round_up(pad, 8)
    slab_rows = row0 + T + pad

    # Reshape weights for the im2col matmul: (K, c_in, c_out) -> (K*c_in, c_out).
    w_flats = [w.reshape(K * w.shape[1], w.shape[2]) for (w, _) in conv_layers]
    biases = [b.reshape(1, -1) for (_, b) in conv_layers]

    in_specs = [
        pl.BlockSpec((b_tile, T, Dw), lambda i: (i, 0, 0)),
        pl.BlockSpec((b_tile, T, Dc), lambda i: (i, 0, 0)),
    ]
    wb_inputs = []
    for wf, bb in zip(w_flats, biases):
        in_specs.append(pl.BlockSpec(wf.shape, lambda i: (0, 0)))  # invariant
        in_specs.append(pl.BlockSpec(bb.shape, lambda i: (0, 0)))  # invariant
        wb_inputs.extend([wf, bb])

    kernel = functools.partial(
        _fused_encoder_kernel, n_layers=n_layers, seq_len=T, ksize=K, pad=pad,
        row0=row0, c0=c0, c_outs=tuple(c_outs), b_tile=b_tile)

    out = pl.pallas_call(
        kernel,
        out_shape=jax.ShapeDtypeStruct((B_pad, T, out_ch), word_emb.dtype),
        grid_spec=pltpu.PrefetchScalarGridSpec(
            num_scalar_prefetch=0,
            grid=(B_pad // b_tile,),
            in_specs=in_specs,
            out_specs=pl.BlockSpec((b_tile, T, out_ch), lambda i: (i, 0, 0)),
            scratch_shapes=[
                pltpu.VMEM((b_tile, slab_rows, c_max), jnp.float32),
                pltpu.VMEM((b_tile, slab_rows, c_max), jnp.float32),
            ],
        ),
        compiler_params=pltpu.CompilerParams(
            dimension_semantics=("parallel",)),
    )(word_emb, char_emb, *wb_inputs)

    return out[:B] if B_pad != B else out


# ----------------------------------------------------------------------------
# WordEncoder forward: embedding gather (glue) + fused Pallas encoder.
# ----------------------------------------------------------------------------
def word_encoder_forward(params, word_inputs, char_embedding_inputs, *,
                         b_tile=None):
    word_embedding = jnp.take(params["embedding"], word_inputs, axis=0)  # (B,T,Dw)
    # TODO(synk): dropout layers are inference-time identity here.
    return fused_word_encoder(word_embedding, char_embedding_inputs,
                              params["conv_layers"], b_tile=b_tile)


# ----------------------------------------------------------------------------
# Pure-JAX reference (sanity check).
# ----------------------------------------------------------------------------
def _conv_ref(x, w, b):
    K = w.shape[0]
    pad = K // 2
    xp = jnp.pad(x, ((0, 0), (pad, pad), (0, 0)))
    T = x.shape[1]
    out = sum(jnp.einsum("btc,cd->btd", xp[:, k:k + T, :], w[k]) for k in range(K))
    return jnp.maximum(out + b, 0.0)


def _forward_ref(params, word_inputs, char_embedding_inputs):
    word_embedding = jnp.take(params["embedding"], word_inputs, axis=0)
    embedded = jnp.concatenate([word_embedding, char_embedding_inputs], axis=-1)
    x = embedded
    for (w, b) in params["conv_layers"]:
        x = _conv_ref(x, w, b)
    return jnp.concatenate([x, embedded], axis=-1)


if __name__ == "__main__":
    # Small deterministic config; B=3 with b_tile=2 also exercises the
    # multi-step grid + batch-padding path.
    B, T = 3, 8
    vocab, d_word, d_char = 50, 16, 16
    kernel_size = 3
    channels = [d_word + d_char, 48, 64, 32]   # channels[0] must equal Dw + Dc

    key = jax.random.PRNGKey(0)
    k_emb, k_char, k_ids, k_w = jax.random.split(key, 4)

    embedding = jax.random.normal(k_emb, (vocab, d_word), jnp.float32) * 0.1
    conv_layers = []
    wkeys = jax.random.split(k_w, len(channels) - 1)
    for i in range(len(channels) - 1):
        c_in, c_out = channels[i], channels[i + 1]
        w = jax.random.normal(wkeys[i], (kernel_size, c_in, c_out), jnp.float32) * 0.05
        bias = jnp.full((c_out,), 0.01, jnp.float32)
        conv_layers.append((w, bias))
    params = {"embedding": embedding, "conv_layers": conv_layers}

    word_inputs = jax.random.randint(k_ids, (B, T), 0, vocab, jnp.int32)
    char_embedding_inputs = jax.random.normal(k_char, (B, T, d_char), jnp.float32) * 0.1

    out = word_encoder_forward(params, word_inputs, char_embedding_inputs, b_tile=2)
    out = jax.block_until_ready(out)

    expected_shape = (B, T, channels[-1] + channels[0])
    assert out.shape == expected_shape, (out.shape, expected_shape)

    ref = _forward_ref(params, word_inputs, char_embedding_inputs)
    max_err = float(jnp.max(jnp.abs(out - ref)))
    assert jnp.allclose(out, ref, atol=1e-4, rtol=1e-4), max_err

    print("KERNEL_OK")
</pallas_src>

<mosaic_0001>
module attributes {stable_mosaic.version = 11 : i64} {
  func.func @_fused_encoder_kernel(%arg0: i32, %arg1: memref<2x8x16xf32, #tpu.memory_space<vmem>>, %arg2: memref<2x8x16xf32, #tpu.memory_space<vmem>>, %arg3: memref<96x48xf32, #tpu.memory_space<vmem>>, %arg4: memref<1x48xf32, #tpu.memory_space<vmem>>, %arg5: memref<144x64xf32, #tpu.memory_space<vmem>>, %arg6: memref<1x64xf32, #tpu.memory_space<vmem>>, %arg7: memref<192x32xf32, #tpu.memory_space<vmem>>, %arg8: memref<1x32xf32, #tpu.memory_space<vmem>>, %arg9: memref<2x8x64xf32, #tpu.memory_space<vmem>>, %arg10: memref<2x17x64xf32, #tpu.memory_space<vmem>>, %arg11: memref<2x17x64xf32, #tpu.memory_space<vmem>>) attributes {dimension_semantics = [#tpu.dimension_semantics<parallel>], iteration_bounds = array<i64: 2>, scalar_prefetch = 0 : i64, scratch_operands = 2 : i64, tpu.core_type = #tpu.core_type<tc>, window_params = [{transform_indices = @transform_0, window_bounds = array<i64: 2, 8, 16>}, {transform_indices = @transform_1, window_bounds = array<i64: 2, 8, 16>}, {pipeline_mode = #tpu.pipeline_mode<synchronous>, transform_indices = @transform_2, window_bounds = array<i64: 96, 48>}, {pipeline_mode = #tpu.pipeline_mode<synchronous>, transform_indices = @transform_3, window_bounds = array<i64: 1, 48>}, {pipeline_mode = #tpu.pipeline_mode<synchronous>, transform_indices = @transform_4, window_bounds = array<i64: 144, 64>}, {pipeline_mode = #tpu.pipeline_mode<synchronous>, transform_indices = @transform_5, window_bounds = array<i64: 1, 64>}, {pipeline_mode = #tpu.pipeline_mode<synchronous>, transform_indices = @transform_6, window_bounds = array<i64: 192, 32>}, {pipeline_mode = #tpu.pipeline_mode<synchronous>, transform_indices = @transform_7, window_bounds = array<i64: 1, 32>}, {transform_indices = @transform_8, window_bounds = array<i64: 2, 8, 64>}]} {
    %cst = arith.constant 0.000000e+00 : f32
    %0 = vector.broadcast %cst : f32 to vector<2x17x64xf32>
    %c0 = arith.constant 0 : index
    %c0_0 = arith.constant 0 : index
    %c0_1 = arith.constant 0 : index
    %1 = vector.load %arg10[%c0, %c0_0, %c0_1] : memref<2x17x64xf32, #tpu.memory_space<vmem>>, vector<2x17x64xf32>
    tpu.vector_store %arg10[%c0, %c0_0, %c0_1], %0 {strides = array<i32>} : memref<2x17x64xf32, #tpu.memory_space<vmem>>, vector<2x17x64xf32>,
    %cst_2 = arith.constant 0.000000e+00 : f32
    %2 = vector.broadcast %cst_2 : f32 to vector<2x17x64xf32>
    %c0_3 = arith.constant 0 : index
    %c0_4 = arith.constant 0 : index
    %c0_5 = arith.constant 0 : index
    %3 = vector.load %arg11[%c0_3, %c0_4, %c0_5] : memref<2x17x64xf32, #tpu.memory_space<vmem>>, vector<2x17x64xf32>
    tpu.vector_store %arg11[%c0_3, %c0_4, %c0_5], %2 {strides = array<i32>} : memref<2x17x64xf32, #tpu.memory_space<vmem>>, vector<2x17x64xf32>,
    %c0_6 = arith.constant 0 : index
    %c0_7 = arith.constant 0 : index
    %c0_8 = arith.constant 0 : index
    %4 = vector.load %arg1[%c0_6, %c0_7, %c0_8] : memref<2x8x16xf32, #tpu.memory_space<vmem>>, vector<2x8x16xf32>
    %c0_9 = arith.constant 0 : index
    %c0_10 = arith.constant 0 : index
    %c0_11 = arith.constant 0 : index
    %5 = vector.load %arg2[%c0_9, %c0_10, %c0_11] : memref<2x8x16xf32, #tpu.memory_space<vmem>>, vector<2x8x16xf32>
    %6 = tpu.concatenate %4, %5 in 2 : vector<2x8x16xf32>, vector<2x8x16xf32> -> vector<2x8x32xf32>
    %c0_12 = arith.constant 0 : index
    %c8 = arith.constant 8 : index
    %c0_13 = arith.constant 0 : index
    %7 = vector.load %arg10[%c0_12, %c8, %c0_13] : memref<2x17x64xf32, #tpu.memory_space<vmem>>, vector<2x8x32xf32>
    tpu.vector_store %arg10[%c0_12, %c8, %c0_13], %6 {strides = array<i32>} : memref<2x17x64xf32, #tpu.memory_space<vmem>>, vector<2x8x32xf32>,
    %c0_14 = arith.constant 0 : index
    %c7 = arith.constant 7 : index
    %c0_15 = arith.constant 0 : index
    %8 = vector.load %arg10[%c0_14, %c7, %c0_15] : memref<2x17x64xf32, #tpu.memory_space<vmem>>, vector<2x8x32xf32>
    %c0_16 = arith.constant 0 : index
    %c8_17 = arith.constant 8 : index
    %c0_18 = arith.constant 0 : index
    %9 = vector.load %arg10[%c0_16, %c8_17, %c0_18] : memref<2x17x64xf32, #tpu.memory_space<vmem>>, vector<2x8x32xf32>
    %c0_19 = arith.constant 0 : index
    %c9 = arith.constant 9 : index
    %c0_20 = arith.constant 0 : index
    %10 = vector.load %arg10[%c0_19, %c9, %c0_20] : memref<2x17x64xf32, #tpu.memory_space<vmem>>, vector<2x8x32xf32>
    %11 = tpu.concatenate %8, %9, %10 in 2 : vector<2x8x32xf32>, vector<2x8x32xf32>, vector<2x8x32xf32> -> vector<2x8x96xf32>
    %12 = vector.shape_cast %11 : vector<2x8x96xf32> to vector<16x96xf32>
    %c0_21 = arith.constant 0 : index
    %c0_22 = arith.constant 0 : index
    %13 = vector.load %arg3[%c0_21, %c0_22] : memref<96x48xf32, #tpu.memory_space<vmem>>, vector<96x48xf32>
    %cst_23 = arith.constant dense<0.000000e+00> : vector<16x48xf32>
    %14 = tpu.matmul %12, %13, %cst_23 {dimension_numbers = #tpu.dot_dimension_numbers<[1], [0], [0], [1], [0, 0, 1, 1], [], []>} : vector<16x96xf32>, vector<96x48xf32>, vector<16x48xf32> -> vector<16x48xf32>
    %c0_24 = arith.constant 0 : index
    %c0_25 = arith.constant 0 : index
    %15 = vector.load %arg4[%c0_24, %c0_25] : memref<1x48xf32, #tpu.memory_space<vmem>>, vector<1x48xf32>
    %16 = vector.broadcast %15 : vector<1x48xf32> to vector<16x48xf32>
    %17 = arith.addf %14, %16 : vector<16x48xf32>
    %cst_26 = arith.constant 0.000000e+00 : f32
    %18 = vector.broadcast %cst_26 : f32 to vector<16x48xf32>
    %19 = arith.maximumf %17, %18 : vector<16x48xf32>
    %20 = vector.shape_cast %19 : vector<16x48xf32> to vector<2x8x48xf32>
    %c0_27 = arith.constant 0 : index
    %c8_28 = arith.constant 8 : index
    %c0_29 = arith.constant 0 : index
    %21 = vector.load %arg11[%c0_27, %c8_28, %c0_29] : memref<2x17x64xf32, #tpu.memory_space<vmem>>, vector<2x8x48xf32>
    tpu.vector_store %arg11[%c0_27, %c8_28, %c0_29], %20 {strides = array<i32>} : memref<2x17x64xf32, #tpu.memory_space<vmem>>, vector<2x8x48xf32>,
    %c0_30 = arith.constant 0 : index
    %c7_31 = arith.constant 7 : index
    %c0_32 = arith.constant 0 : index
    %22 = vector.load %arg11[%c0_30, %c7_31, %c0_32] : memref<2x17x64xf32, #tpu.memory_space<vmem>>, vector<2x8x48xf32>
    %c0_33 = arith.constant 0 : index
    %c8_34 = arith.constant 8 : index
    %c0_35 = arith.constant 0 : index
    %23 = vector.load %arg11[%c0_33, %c8_34, %c0_35] : memref<2x17x64xf32, #tpu.memory_space<vmem>>, vector<2x8x48xf32>
    %c0_36 = arith.constant 0 : index
    %c9_37 = arith.constant 9 : index
    %c0_38 = arith.constant 0 : index
    %24 = vector.load %arg11[%c0_36, %c9_37, %c0_38] : memref<2x17x64xf32, #tpu.memory_space<vmem>>, vector<2x8x48xf32>
    %25 = tpu.concatenate %22, %23, %24 in 2 : vector<2x8x48xf32>, vector<2x8x48xf32>, vector<2x8x48xf32> -> vector<2x8x144xf32>
    %26 = vector.shape_cast %25 : vector<2x8x144xf32> to vector<16x144xf32>
    %c0_39 = arith.constant 0 : index
    %c0_40 = arith.constant 0 : index
    %27 = vector.load %arg5[%c0_39, %c0_40] : memref<144x64xf32, #tpu.memory_space<vmem>>, vector<144x64xf32>
    %cst_41 = arith.constant dense<0.000000e+00> : vector<16x64xf32>
    %28 = tpu.matmul %26, %27, %cst_41 {dimension_numbers = #tpu.dot_dimension_numbers<[1], [0], [0], [1], [0, 0, 1, 1], [], []>} : vector<16x144xf32>, vector<144x64xf32>, vector<16x64xf32> -> vector<16x64xf32>
    %c0_42 = arith.constant 0 : index
    %c0_43 = arith.constant 0 : index
    %29 = vector.load %arg6[%c0_42, %c0_43] : memref<1x64xf32, #tpu.memory_space<vmem>>, vector<1x64xf32>
    %30 = vector.broadcast %29 : vector<1x64xf32> to vector<16x64xf32>
    %31 = arith.addf %28, %30 : vector<16x64xf32>
    %cst_44 = arith.constant 0.000000e+00 : f32
    %32 = vector.broadcast %cst_44 : f32 to vector<16x64xf32>
    %33 = arith.maximumf %31, %32 : vector<16x64xf32>
    %34 = vector.shape_cast %33 : vector<16x64xf32> to vector<2x8x64xf32>
    %c0_45 = arith.constant 0 : index
    %c8_46 = arith.constant 8 : index
    %c0_47 = arith.constant 0 : index
    %35 = vector.load %arg10[%c0_45, %c8_46, %c0_47] : memref<2x17x64xf32, #tpu.memory_space<vmem>>, vector<2x8x64xf32>
    tpu.vector_store %arg10[%c0_45, %c8_46, %c0_47], %34 {strides = array<i32>} : memref<2x17x64xf32, #tpu.memory_space<vmem>>, vector<2x8x64xf32>,
    %c0_48 = arith.constant 0 : index
    %c7_49 = arith.constant 7 : index
    %c0_50 = arith.constant 0 : index
    %36 = vector.load %arg10[%c0_48, %c7_49, %c0_50] : memref<2x17x64xf32, #tpu.memory_space<vmem>>, vector<2x8x64xf32>
    %c0_51 = arith.constant 0 : index
    %c8_52 = arith.constant 8 : index
    %c0_53 = arith.constant 0 : index
    %37 = vector.load %arg10[%c0_51, %c8_52, %c0_53] : memref<2x17x64xf32, #tpu.memory_space<vmem>>, vector<2x8x64xf32>
    %c0_54 = arith.constant 0 : index
    %c9_55 = arith.constant 9 : index
    %c0_56 = arith.constant 0 : index
    %38 = vector.load %arg10[%c0_54, %c9_55, %c0_56] : memref<2x17x64xf32, #tpu.memory_space<vmem>>, vector<2x8x64xf32>
    %39 = tpu.concatenate %36, %37, %38 in 2 : vector<2x8x64xf32>, vector<2x8x64xf32>, vector<2x8x64xf32> -> vector<2x8x192xf32>
    %40 = vector.shape_cast %39 : vector<2x8x192xf32> to vector<16x192xf32>
    %c0_57 = arith.constant 0 : index
    %c0_58 = arith.constant 0 : index
    %41 = vector.load %arg7[%c0_57, %c0_58] : memref<192x32xf32, #tpu.memory_space<vmem>>, vector<192x32xf32>
    %cst_59 = arith.constant dense<0.000000e+00> : vector<16x32xf32>
    %42 = tpu.matmul %40, %41, %cst_59 {dimension_numbers = #tpu.dot_dimension_numbers<[1], [0], [0], [1], [0, 0, 1, 1], [], []>} : vector<16x192xf32>, vector<192x32xf32>, vector<16x32xf32> -> vector<16x32xf32>
    %c0_60 = arith.constant 0 : index
    %c0_61 = arith.constant 0 : index
    %43 = vector.load %arg8[%c0_60, %c0_61] : memref<1x32xf32, #tpu.memory_space<vmem>>, vector<1x32xf32>
    %44 = vector.broadcast %43 : vector<1x32xf32> to vector<16x32xf32>
    %45 = arith.addf %42, %44 : vector<16x32xf32>
    %cst_62 = arith.constant 0.000000e+00 : f32
    %46 = vector.broadcast %cst_62 : f32 to vector<16x32xf32>
    %47 = arith.maximumf %45, %46 : vector<16x32xf32>
    %48 = vector.shape_cast %47 : vector<16x32xf32> to vector<2x8x32xf32>
    %49 = tpu.concatenate %48, %6 in 2 : vector<2x8x32xf32>, vector<2x8x32xf32> -> vector<2x8x64xf32>
    %c0_63 = arith.constant 0 : index
    %c0_64 = arith.constant 0 : index
    %c0_65 = arith.constant 0 : index
    %50 = vector.load %arg9[%c0_63, %c0_64, %c0_65] : memref<2x8x64xf32, #tpu.memory_space<vmem>>, vector<2x8x64xf32>
    tpu.vector_store %arg9[%c0_63, %c0_64, %c0_65], %49 {strides = array<i32>} : memref<2x8x64xf32, #tpu.memory_space<vmem>>, vector<2x8x64xf32>,
    return
  }
  func.func @transform_0(%arg0: i32) -> (i32, i32, i32) {
    %c0_i32 = arith.constant 0 : i32
    %c0_i32_0 = arith.constant 0 : i32
    %c0_i32_1 = arith.constant 0 : i32
    return %arg0, %c0_i32, %c0_i32_0 : i32, i32, i32
  }
  func.func @transform_1(%arg0: i32) -> (i32, i32, i32) {
    %c0_i32 = arith.constant 0 : i32
    %c0_i32_0 = arith.constant 0 : i32
    %c0_i32_1 = arith.constant 0 : i32
    return %arg0, %c0_i32, %c0_i32_0 : i32, i32, i32
  }
  func.func @transform_2(%arg0: i32) -> (i32, i32) {
    %c0_i32 = arith.constant 0 : i32
    %c0_i32_0 = arith.constant 0 : i32
    %c0_i32_1 = arith.constant 0 : i32
    return %c0_i32, %c0_i32_0 : i32, i32
  }
  func.func @transform_3(%arg0: i32) -> (i32, i32) {
    %c0_i32 = arith.constant 0 : i32
    %c0_i32_0 = arith.constant 0 : i32
    %c0_i32_1 = arith.constant 0 : i32
    return %c0_i32, %c0_i32_0 : i32, i32
  }
  func.func @transform_4(%arg0: i32) -> (i32, i32) {
    %c0_i32 = arith.constant 0 : i32
    %c0_i32_0 = arith.constant 0 : i32
    %c0_i32_1 = arith.constant 0 : i32
    return %c0_i32, %c0_i32_0 : i32, i32
  }
  func.func @transform_5(%arg0: i32) -> (i32, i32) {
    %c0_i32 = arith.constant 0 : i32
    %c0_i32_0 = arith.constant 0 : i32
    %c0_i32_1 = arith.constant 0 : i32
    return %c0_i32, %c0_i32_0 : i32, i32
  }
  func.func @transform_6(%arg0: i32) -> (i32, i32) {
    %c0_i32 = arith.constant 0 : i32
    %c0_i32_0 = arith.constant 0 : i32
    %c0_i32_1 = arith.constant 0 : i32
    return %c0_i32, %c0_i32_0 : i32, i32
  }
  func.func @transform_7(%arg0: i32) -> (i32, i32) {
    %c0_i32 = arith.constant 0 : i32
    %c0_i32_0 = arith.constant 0 : i32
    %c0_i32_1 = arith.constant 0 : i32
    return %c0_i32, %c0_i32_0 : i32, i32
  }
  func.func @transform_8(%arg0: i32) -> (i32, i32, i32) {
    %c0_i32 = arith.constant 0 : i32
    %c0_i32_0 = arith.constant 0 : i32
    %c0_i32_1 = arith.constant 0 : i32
    return %arg0, %c0_i32, %c0_i32_0 : i32, i32, i32
  }
}

</mosaic_0001>

<llo_original>
// kernel: tpu_custom_call.1
$region0: #{tpu_custom_call.1}
  #allocation0 [shape = 'u32[]', space=smem, size = 0x4, offset = 0x4, fixed_abs, tag = 'smem constant byte address 0x4 - core index']
  #allocation1 [shape = 'u32[72,128]{1,0:T(1,128)}', space=vmem, size = 0x9000, scoped, tag = 'internal scratch']
  #allocation2 [shape = 'f32[2,17,64]{2,1,0:T(8,128)}', space=vmem, size = 0x6000, scoped, tag = 'scratch operand']
  #allocation3 [shape = 'f32[2,17,64]{2,1,0:T(8,128)}', space=vmem, size = 0x6000, scoped, tag = 'scratch operand']
  %s0 = inlined_call_operand.vmem [shape: f32[4,8,16], index: 0, kind: input, shape index: {}]
  %s1 = inlined_call_operand.vmem [shape: f32[4,8,16], index: 1, kind: input, shape index: {}]
  %s2 = inlined_call_operand.vmem [shape: f32[96,48], index: 2, kind: input, shape index: {}]
  %s3 = inlined_call_operand.vmem [shape: f32[1,48], index: 3, kind: input, shape index: {}]
  %s4 = inlined_call_operand.vmem [shape: f32[144,64], index: 4, kind: input, shape index: {}]
  %s5 = inlined_call_operand.vmem [shape: f32[1,64], index: 5, kind: input, shape index: {}]
  %s6 = inlined_call_operand.vmem [shape: f32[192,32], index: 6, kind: input, shape index: {}]
  %s7 = inlined_call_operand.vmem [shape: f32[1,32], index: 7, kind: input, shape index: {}]
  %s8 = inlined_call_operand.hbm [shape: f32[4,8,64], index: 8, kind: output, shape index: {}]
  %s9 = sld [smem:[#allocation0]]
  $region65: #{tpu_custom_call.1} parent=0
    _
  %s11 = ssub.s32 1, %s9
  %s12 = scalar_select 0, %s11, %s9
  $region1: #{tpu_custom_call.1} parent=0
    #allocation4 [shape = 'u8[16384]{0}', space=vmem, size = 0x4000, scoped, tag = 'output window, operand 0']
    #allocation5 [shape = 's32[2]{0}', space=sflag, size = 0x8, scoped, tag = 'scoped memory for tpu_custom_call.1']
    %13 = vsyncpa [#allocation5], 0
    %s14 = scalar_lea.sflag [#allocation5], 1
    %15 = vsyncpa %s14, 0
    loop: start=0, step=1, limit=4
    $region2: #{tpu_custom_call.1} parent=1 // loop_pre_header
      _
    $region3: #{tpu_custom_call.1} parent=1 // loop_header
      %s17 = sphi 0, %s21
      %p18 = scmp.ge.s32.totalorder %s17, 4
      %s27 = sphi 0, %s29
      %s30 = sphi 0, %s27
      %s31 = sphi 0, %s30
      %s47 = sphi 0, %s31
      %s53 = sphi 0, %s55
      %s56 = sphi 0, %s53
      %s57 = sphi 0, %s56
      %s73 = sphi 0, %s57
      %s77 = sphi 0, %s77
      %s79 = sphi 0, %s77
      %s80 = sphi 0, %s79
      %s94 = sphi 0, %s80
      %s98 = sphi 0, %s98
      %s100 = sphi 0, %s98
      %s101 = sphi 0, %s100
      %s115 = sphi 0, %s101
      %s119 = sphi 0, %s119
      %s121 = sphi 0, %s119
      %s122 = sphi 0, %s121
      %s136 = sphi 0, %s122
      %s140 = sphi 0, %s140
      %s142 = sphi 0, %s140
      %s143 = sphi 0, %s142
      %s157 = sphi 0, %s143
      %s161 = sphi 0, %s161
      %s163 = sphi 0, %s161
      %s164 = sphi 0, %s163
      %s178 = sphi 0, %s164
      %s182 = sphi 0, %s182
      %s184 = sphi 0, %s182
      %s185 = sphi 0, %s184
      %s199 = sphi 0, %s185
      %s205 = sphi 0, %s207
      %s208 = sphi 0, %s205
      %s209 = sphi 0, %s208
      %s225 = sphi 0, %s209
    $region4: #{tpu_custom_call.1} parent=1 // loop_header_branch
      %20 = sbr.rel (%p18) target = $region8
    $region5: #{tpu_custom_call.1} parent=1 // loop_body
      %s22 = ssub.s32 %s17, 1
      %s23 = ssub.s32 %s17, 2
      %s24 = sadd.s32 %s17, 1
      %s25 = ssub.s32 %s17, %s24
      %p26 = scmp.eq.s32.totalorder %s25, 0
      %s28 = sadd.s32 %s27, 1
      %s29 = scalar_select %p26, %s27, %s28
      %p32 = pneg %p26
      %p33 = scmp.eq.s32.totalorder %s17, 1
      %p34 = por %p32, %p33
      %p35 = scmp.ne.s32.totalorder %s27, %s30
      %p36 = scmp.eq.s32.totalorder %s17, 0
      %p37 = por %p35, %p36
      %p38 = scmp.ne.s32.totalorder %s27, %s30
      %p39 = scmp.eq.s32.totalorder %s22, 1
      %p40 = por %p38, %p39
      %p41 = scmp.ne.s32.totalorder %s30, %s31
      %p42 = scmp.eq.s32.totalorder %s22, 0
      %p43 = por %p41, %p42
      %p44 = scmp.ne.s32.totalorder %s30, %s31
      %p45 = scmp.eq.s32.totalorder %s23, 1
      %p46 = por %p44, %p45
      %p48 = scmp.ne.s32.totalorder %s31, %s47
      %p49 = scmp.eq.s32.totalorder %s23, 0
      %p50 = por %p48, %p49
      %s51 = ssub.s32 %s17, %s24
      %p52 = scmp.eq.s32.totalorder %s51, 0
      %s54 = sadd.s32 %s53, 1
      %s55 = scalar_select %p52, %s53, %s54
      %p58 = pneg %p52
      %p59 = scmp.eq.s32.totalorder %s17, 1
      %p60 = por %p58, %p59
      %p61 = scmp.ne.s32.totalorder %s53, %s56
      %p62 = scmp.eq.s32.totalorder %s17, 0
      %p63 = por %p61, %p62
      %p64 = scmp.ne.s32.totalorder %s53, %s56
      %p65 = scmp.eq.s32.totalorder %s22, 1
      %p66 = por %p64, %p65
      %p67 = scmp.ne.s32.totalorder %s56, %s57
      %p68 = scmp.eq.s32.totalorder %s22, 0
      %p69 = por %p67, %p68
      %p70 = scmp.ne.s32.totalorder %s56, %s57
      %p71 = scmp.eq.s32.totalorder %s23, 1
      %p72 = por %p70, %p71
      %p74 = scmp.ne.s32.totalorder %s57, %s73
      %p75 = scmp.eq.s32.totalorder %s23, 0
      %p76 = por %p74, %p75
      %s78 = sadd.s32 %s77, 1
      %p81 = scmp.eq.s32.totalorder %s17, 1
      %p82 = scmp.ne.s32.totalorder %s77, %s79
      %p83 = scmp.eq.s32.totalorder %s17, 0
      %p84 = por %p82, %p83
      %p85 = scmp.ne.s32.totalorder %s77, %s79
      %p86 = scmp.eq.s32.totalorder %s22, 1
      %p87 = por %p85, %p86
      %p88 = scmp.ne.s32.totalorder %s79, %s80
      %p89 = scmp.eq.s32.totalorder %s22, 0
      %p90 = por %p88, %p89
      %p91 = scmp.ne.s32.totalorder %s79, %s80
      %p92 = scmp.eq.s32.totalorder %s23, 1
      %p93 = por %p91, %p92
      %p95 = scmp.ne.s32.totalorder %s80, %s94
      %p96 = scmp.eq.s32.totalorder %s23, 0
      %p97 = por %p95, %p96
      %s99 = sadd.s32 %s98, 1
      %p102 = scmp.eq.s32.totalorder %s17, 1
      %p103 = scmp.ne.s32.totalorder %s98, %s100
      %p104 = scmp.eq.s32.totalorder %s17, 0
      %p105 = por %p103, %p104
      %p106 = scmp.ne.s32.totalorder %s98, %s100
      %p107 = scmp.eq.s32.totalorder %s22, 1
      %p108 = por %p106, %p107
      %p109 = scmp.ne.s32.totalorder %s100, %s101
      %p110 = scmp.eq.s32.totalorder %s22, 0
      %p111 = por %p109, %p110
      %p112 = scmp.ne.s32.totalorder %s100, %s101
      %p113 = scmp.eq.s32.totalorder %s23, 1
      %p114 = por %p112, %p113
      %p116 = scmp.ne.s32.totalorder %s101, %s115
      %p117 = scmp.eq.s32.totalorder %s23, 0
      %p118 = por %p116, %p117
      %s120 = sadd.s32 %s119, 1
      %p123 = scmp.eq.s32.totalorder %s17, 1
      %p124 = scmp.ne.s32.totalorder %s119, %s121
      %p125 = scmp.eq.s32.totalorder %s17, 0
      %p126 = por %p124, %p125
      %p127 = scmp.ne.s32.totalorder %s119, %s121
      %p128 = scmp.eq.s32.totalorder %s22, 1
      %p129 = por %p127, %p128
      %p130 = scmp.ne.s32.totalorder %s121, %s122
      %p131 = scmp.eq.s32.totalorder %s22, 0
      %p132 = por %p130, %p131
      %p133 = scmp.ne.s32.totalorder %s121, %s122
      %p134 = scmp.eq.s32.totalorder %s23, 1
      %p135 = por %p133, %p134
      %p137 = scmp.ne.s32.totalorder %s122, %s136
      %p138 = scmp.eq.s32.totalorder %s23, 0
      %p139 = por %p137, %p138
      %s141 = sadd.s32 %s140, 1
      %p144 = scmp.eq.s32.totalorder %s17, 1
      %p145 = scmp.ne.s32.totalorder %s140, %s142
      %p146 = scmp.eq.s32.totalorder %s17, 0
      %p147 = por %p145, %p146
      %p148 = scmp.ne.s32.totalorder %s140, %s142
      %p149 = scmp.eq.s32.totalorder %s22, 1
      %p150 = por %p148, %p149
      %p151 = scmp.ne.s32.totalorder %s142, %s143
      %p152 = scmp.eq.s32.totalorder %s22, 0
      %p153 = por %p151, %p152
      %p154 = scmp.ne.s32.totalorder %s142, %s143
      %p155 = scmp.eq.s32.totalorder %s23, 1
      %p156 = por %p154, %p155
      %p158 = scmp.ne.s32.totalorder %s143, %s157
      %p159 = scmp.eq.s32.totalorder %s23, 0
      %p160 = por %p158, %p159
      %s162 = sadd.s32 %s161, 1
      %p165 = scmp.eq.s32.totalorder %s17, 1
      %p166 = scmp.ne.s32.totalorder %s161, %s163
      %p167 = scmp.eq.s32.totalorder %s17, 0
      %p168 = por %p166, %p167
      %p169 = scmp.ne.s32.totalorder %s161, %s163
      %p170 = scmp.eq.s32.totalorder %s22, 1
      %p171 = por %p169, %p170
      %p172 = scmp.ne.s32.totalorder %s163, %s164
      %p173 = scmp.eq.s32.totalorder %s22, 0
      %p174 = por %p172, %p173
      %p175 = scmp.ne.s32.totalorder %s163, %s164
      %p176 = scmp.eq.s32.totalorder %s23, 1
      %p177 = por %p175, %p176
      %p179 = scmp.ne.s32.totalorder %s164, %s178
      %p180 = scmp.eq.s32.totalorder %s23, 0
      %p181 = por %p179, %p180
      %s183 = sadd.s32 %s182, 1
      %p186 = scmp.eq.s32.totalorder %s17, 1
      %p187 = scmp.ne.s32.totalorder %s182, %s184
      %p188 = scmp.eq.s32.totalorder %s17, 0
      %p189 = por %p187, %p188
      %p190 = scmp.ne.s32.totalorder %s182, %s184
      %p191 = scmp.eq.s32.totalorder %s22, 1
      %p192 = por %p190, %p191
      %p193 = scmp.ne.s32.totalorder %s184, %s185
      %p194 = scmp.eq.s32.totalorder %s22, 0
      %p195 = por %p193, %p194
      %p196 = scmp.ne.s32.totalorder %s184, %s185
      %p197 = scmp.eq.s32.totalorder %s23, 1
      %p198 = por %p196, %p197
      %p200 = scmp.ne.s32.totalorder %s185, %s199
      %p201 = scmp.eq.s32.totalorder %s23, 0
      %p202 = por %p200, %p201
      %s203 = ssub.s32 %s17, %s24
      %p204 = scmp.eq.s32.totalorder %s203, 0
      %s206 = sadd.s32 %s205, 1
      %s207 = scalar_select %p204, %s205, %s206
      %p210 = pneg %p204
      %p211 = scmp.eq.s32.totalorder %s17, 1
      %p212 = por %p210, %p211
      %p213 = scmp.ne.s32.totalorder %s205, %s208
      %p214 = scmp.eq.s32.totalorder %s17, 0
      %p215 = por %p213, %p214
      %p216 = scmp.ne.s32.totalorder %s205, %s208
      %p217 = scmp.eq.s32.totalorder %s22, 1
      %p218 = por %p216, %p217
      %p219 = scmp.ne.s32.totalorder %s208, %s209
      %p220 = scmp.eq.s32.totalorder %s22, 0
      %p221 = por %p219, %p220
      %p222 = scmp.ne.s32.totalorder %s208, %s209
      %p223 = scmp.eq.s32.totalorder %s23, 1
      %p224 = por %p222, %p223
      %p226 = scmp.ne.s32.totalorder %s209, %s225
      %p227 = scmp.eq.s32.totalorder %s23, 0
      %p228 = por %p226, %p227
      %p229 = scmp.le.s32.totalorder 1, %s17
      %p230 = scmp.lt.s32.totalorder %s17, 3
      %p231 = pnand %p229, %p230
      %p232 = pneg %p231
      // Predicated region
      $region9: #{tpu_custom_call.1} parent=5 // pred_check
        _
      $region10: #{tpu_custom_call.1} parent=5 // pred_check_branch
        %234 = sbr.rel (%p231) target = $region12
      $region11: #{tpu_custom_call.1} parent=5 // pred_region
        %s235 = ssub.s32 %s17, 1
        // Predicated region
        $region13: #{tpu_custom_call.1} parent=11 // pred_check
          %p236 = pneg %p90
        $region14: #{tpu_custom_call.1} parent=11 // pred_check_branch
          %238 = sbr.rel (%p236) target = $region16
        $region15: #{tpu_custom_call.1} parent=11 // pred_region
          _
        $region16: #{tpu_custom_call.1} parent=11 // pred_fallthru
          _
        // Predicated region
        $region17: #{tpu_custom_call.1} parent=11 // pred_check
          %p239 = pneg %p111
        $region18: #{tpu_custom_call.1} parent=11 // pred_check_branch
          %241 = sbr.rel (%p239) target = $region20
        $region19: #{tpu_custom_call.1} parent=11 // pred_region
          _
        $region20: #{tpu_custom_call.1} parent=11 // pred_fallthru
          _
        // Predicated region
        $region21: #{tpu_custom_call.1} parent=11 // pred_check
          %p242 = pneg %p132
        $region22: #{tpu_custom_call.1} parent=11 // pred_check_branch
          %244 = sbr.rel (%p242) target = $region24
        $region23: #{tpu_custom_call.1} parent=11 // pred_region
          _
        $region24: #{tpu_custom_call.1} parent=11 // pred_fallthru
          _
        // Predicated region
        $region25: #{tpu_custom_call.1} parent=11 // pred_check
          %p245 = pneg %p153
        $region26: #{tpu_custom_call.1} parent=11 // pred_check_branch
          %247 = sbr.rel (%p245) target = $region28
        $region27: #{tpu_custom_call.1} parent=11 // pred_region
          _
        $region28: #{tpu_custom_call.1} parent=11 // pred_fallthru
          _
        // Predicated region
        $region29: #{tpu_custom_call.1} parent=11 // pred_check
          %p248 = pneg %p174
        $region30: #{tpu_custom_call.1} parent=11 // pred_check_branch
          %250 = sbr.rel (%p248) target = $region32
        $region31: #{tpu_custom_call.1} parent=11 // pred_region
          _
        $region32: #{tpu_custom_call.1} parent=11 // pred_fallthru
          _
        // Predicated region
        $region33: #{tpu_custom_call.1} parent=11 // pred_check
          %p251 = pneg %p195
        $region34: #{tpu_custom_call.1} parent=11 // pred_check_branch
          %253 = sbr.rel (%p251) target = $region36
        $region35: #{tpu_custom_call.1} parent=11 // pred_region
          _
        $region36: #{tpu_custom_call.1} parent=11 // pred_fallthru
          _
      $region12: #{tpu_custom_call.1} parent=5 // pred_fallthru
        _
      %p254 = scmp.lt.s32.totalorder %s17, 2
      // Predicated region
      $region37: #{tpu_custom_call.1} parent=5 // pred_check
        %p255 = pneg %p254
      $region38: #{tpu_custom_call.1} parent=5 // pred_check_branch
        %257 = sbr.rel (%p255) target = $region40
      $region39: #{tpu_custom_call.1} parent=5 // pred_region
        // Predicated region
        $region41: #{tpu_custom_call.1} parent=39 // pred_check
          %p258 = pneg %p37
        $region42: #{tpu_custom_call.1} parent=39 // pred_check_branch
          %260 = sbr.rel (%p258) target = $region44
        $region43: #{tpu_custom_call.1} parent=39 // pred_region
          %s261 = smul.u32 2, %s17
          %p262 = scmp.lt.s32.totalorder %s261, 3
          %s263 = scalar_select %p262, %s261, 3
          %s264 = smul.addr %s263, 8
          %s265 = scalar_lea.vmem %s0, %s264
          %s266 = smul.u32 2, %s17
        $region44: #{tpu_custom_call.1} parent=39 // pred_fallthru
          _
        // Predicated region
        $region45: #{tpu_custom_call.1} parent=39 // pred_check
          %p267 = pneg %p63
        $region46: #{tpu_custom_call.1} parent=39 // pred_check_branch
          %269 = sbr.rel (%p267) target = $region48
        $region47: #{tpu_custom_call.1} parent=39 // pred_region
          %s270 = smul.u32 2, %s17
          %p271 = scmp.lt.s32.totalorder %s270, 3
          %s272 = scalar_select %p271, %s270, 3
          %s273 = smul.addr %s272, 8
          %s274 = scalar_lea.vmem %s1, %s273
          %s275 = smul.u32 2, %s17
        $region48: #{tpu_custom_call.1} parent=39 // pred_fallthru
          _
      $region40: #{tpu_custom_call.1} parent=5 // pred_fallthru
        _
      %p276 = scmp.le.s32.totalorder 1, %s17
      %p277 = scmp.lt.s32.totalorder %s17, 3
      %p278 = pnand %p276, %p277
      %p279 = pneg %p278
      // Predicated region
      $region49: #{tpu_custom_call.1} parent=5 // pred_check
        _
      $region50: #{tpu_custom_call.1} parent=5 // pred_check_branch
        %281 = sbr.rel (%p278) target = $region52
      $region51: #{tpu_custom_call.1} parent=5 // pred_region
        %s282 = ssub.s32 %s17, 1
        %s283 = smul.u32 2, %s22
        %p284 = scmp.lt.s32.totalorder %s283, 3
        %s285 = scalar_select %p284, %s283, 3
        %s286 = smul.addr %s285, 8
        %s287 = scalar_lea.vmem %s0, %s286
        %p288 = pneg %p43
        %p289 = pneg %p40
        %s290 = smul.u32 2, %s22
        %p291 = scmp.lt.s32.totalorder %s290, 3
        %s292 = scalar_select %p291, %s290, 3
        %s293 = smul.addr %s292, 8
        %s294 = scalar_lea.vmem %s1, %s293
        %p295 = pneg %p69
        %p296 = pneg %p66
        %p297 = pneg %p90
        %p298 = pneg %p87
        %p299 = pneg %p111
        %p300 = pneg %p108
        %p301 = pneg %p132
        %p302 = pneg %p129
        %p303 = pneg %p153
        %p304 = pneg %p150
        %p305 = pneg %p174
        %p306 = pneg %p171
        %p307 = pneg %p195
        %p308 = pneg %p192
        %p309 = pneg %p221
        %p310 = pneg %p218
        %s311 = sand.u32 %s208, 1
        %s312 = scalar_lea.sflag [#allocation5], %s311
        %s313 = sand.u32 %s208, 1
        %s314 = smul.addr %s313, 16
        %s315 = scalar_lea.vmem [#allocation4], %s314
        %s316 = smul.u32 2, %s22
        %p317 = scmp.lt.s32.totalorder %s316, 3
        %s318 = scalar_select %p317, %s316, 3
        %s319 = smul.addr %s318, 8
        %s320 = scalar_lea.vmem %s0, %s319
        %s321 = smul.u32 2, %s22
        %s322 = smul.u32 2, %s22
        %p323 = scmp.lt.s32.totalorder %s322, 3
        %s324 = scalar_select %p323, %s322, 3
        %s325 = smul.addr %s324, 8
        %s326 = scalar_lea.vmem %s1, %s325
        %s327 = smul.u32 2, %s22
        %s328 = smul.u32 2, %s22
        %vm329 = vcmask 523264
        %330 = vst.msk [vmem:[#allocation2] sm:$0xff] %vm329, 0.0
        %331 = vst.msk [vmem:[#allocation2 + $0x8] sm:$0xff] %vm329, 0.0
        %vm332 = vcmask 516096
        %333 = vst.msk [vmem:[#allocation2 + $0x10] sm:$0x1] %vm332, 0.0
        %334 = vst.msk [vmem:[#allocation2 + $0x18] sm:$0xff] %vm329, 0.0
        %335 = vst.msk [vmem:[#allocation2 + $0x20] sm:$0xff] %vm329, 0.0
        %336 = vst.msk [vmem:[#allocation2 + $0x28] sm:$0x1] %vm332, 0.0
        %337 = vst.msk [vmem:[#allocation3] sm:$0xff] %vm329, 0.0
        %338 = vst.msk [vmem:[#allocation3 + $0x8] sm:$0xff] %vm329, 0.0
        %339 = vst.msk [vmem:[#allocation3 + $0x10] sm:$0x1] %vm332, 0.0
        %340 = vst.msk [vmem:[#allocation3 + $0x18] sm:$0xff] %vm329, 0.0
        %341 = vst.msk [vmem:[#allocation3 + $0x20] sm:$0xff] %vm329, 0.0
        %342 = vst.msk [vmem:[#allocation3 + $0x28] sm:$0x1] %vm332, 0.0
        %v343 = vld [vmem:[%s320] sm:$0xff]
        %v344 = vld [vmem:[%s320 + $0x8] sm:$0xff]
        %v345 = vld [vmem:[%s326] sm:$0xff]
        %v346 = vld [vmem:[%s326 + $0x8] sm:$0xff]
        %349 = vrot.lane.b32.xlu0 %v345, 16
        %v350 = vpop.permute.xlu0 %349
        %351 = vrot.lane.b32.xlu0 %v346, 16
        %v352 = vpop.permute.xlu0 %351
        %vm355 = vcmask 130048
        %v356 = vsel %vm355, %v343, %v350
        %v357 = vsel %vm355, %v344, %v352
        %vm358 = vcmask 261120
        %359 = vst.msk [vmem:[#allocation2 + $0x8] sm:$0xff] %vm358, %v356
        %360 = vst.msk [vmem:[#allocation2 + $0x20] sm:$0xff] %vm358, %v357
        %v361 = vld [vmem:[#allocation2 + $0x7] sm:$0xff]
        %v362 = vld [vmem:[#allocation2 + $0x1f] sm:$0xff]
        %v363 = vld [vmem:[#allocation2 + $0x8] sm:$0xff]
        %v364 = vld [vmem:[#allocation2 + $0x20] sm:$0xff]
        %v365 = vld [vmem:[#allocation2 + $0x9] sm:$0xff]
        %v366 = vld [vmem:[#allocation2 + $0x21] sm:$0xff]
        %369 = vrot.lane.b32.xlu0 %v363, 32
        %v370 = vpop.permute.xlu0 %369
        %371 = vrot.lane.b32.xlu0 %v364, 32
        %v372 = vpop.permute.xlu0 %371
        %377 = vrot.lane.b32.xlu0 %v365, 64
        %v378 = vpop.permute.xlu0 %377
        %379 = vrot.lane.b32.xlu0 %v366, 64
        %v380 = vpop.permute.xlu0 %379
        %v383 = vsel %vm358, %v361, %v370
        %v384 = vsel %vm358, %v362, %v372
        %v385 = vsel %vm329, %v383, %v378
        %v386 = vsel %vm329, %v384, %v380
        %v387 = vld [vmem:[%s2] sm:$0xff]
        %v388 = vld [vmem:[%s2 + $0x8] sm:$0xff]
        %v389 = vld [vmem:[%s2 + $0x10] sm:$0xff]
        %v390 = vld [vmem:[%s2 + $0x18] sm:$0xff]
        %v391 = vld [vmem:[%s2 + $0x20] sm:$0xff]
        %v392 = vld [vmem:[%s2 + $0x28] sm:$0xff]
        %v393 = vld [vmem:[%s2 + $0x30] sm:$0xff]
        %v394 = vld [vmem:[%s2 + $0x38] sm:$0xff]
        %v395 = vld [vmem:[%s2 + $0x40] sm:$0xff]
        %v396 = vld [vmem:[%s2 + $0x48] sm:$0xff]
        %v397 = vld [vmem:[%s2 + $0x50] sm:$0xff]
        %v398 = vld [vmem:[%s2 + $0x58] sm:$0xff]
        %v399 = vld [vmem:[%s3] sm:$0x1]
        %v401 = vperm.slane %v399, 0
        %vm403 = vcmask 785408
        %v405 = vsel %vm403, %v385, 0
        %v408 = vsel %vm403, %v386, 0
        %410 = vmatpush.msra.mxu0 0.0
        %411 = vmatpush.msra.mxu0 0.0
        %412 = vmatpush.msra.mxu0 0.0
        %413 = vmatpush.msra.mxu0 0.0
        %414 = vmatpush.msra.mxu0 %v398
        %415 = vmatpush.msra.mxu0 %v397
        %416 = vmatpush.msra.mxu0 %v396
        %417 = vmatpush.msra.mxu0 %v395
        %418 = vmatpush.msra.mxu0 %v394
        %419 = vmatpush.msra.mxu0 %v393
        %420 = vmatpush.msra.mxu0 %v392
        %421 = vmatpush.msra.mxu0 %v391
        %422 = vmatpush.msra.mxu0 %v390
        %423 = vmatpush.msra.mxu0 %v389
        %424 = vmatpush.msra.mxu0 %v388
        %425 = vmatpush.msra.mxu0 %v387
        %426 = vmatmul.f32.gmra.mxu0 %v405
        %v427 = vpop.f32.mrf.mxu0
        %v428 = vadd.f32 %v401, %v427
        %429 = vmatmul.f32.gmra.mxu0 %v408
        %v430 = vpop.f32.mrf.mxu0
        %v431 = vadd.f32 %v401, %v430
        %432 = vdwg.mxu0
        %v433 = vmax.f32 %v428, 0.0
        %v434 = vmax.f32 %v431, 0.0
        %vm435 = vcmask 392192
        %436 = vst.msk [vmem:[#allocation3 + $0x8] sm:$0xff] %vm435, %v433
        %437 = vst.msk [vmem:[#allocation3 + $0x20] sm:$0xff] %vm435, %v434
        %v438 = vld [vmem:[#allocation3 + $0x7] sm:$0xff]
        %v439 = vld [vmem:[#allocation3 + $0x1f] sm:$0xff]
        %v440 = vld [vmem:[#allocation3 + $0x8] sm:$0xff]
        %v441 = vld [vmem:[#allocation3 + $0x20] sm:$0xff]
        %v442 = vld [vmem:[#allocation3 + $0x9] sm:$0xff]
        %v443 = vld [vmem:[#allocation3 + $0x21] sm:$0xff]
        %446 = vrot.lane.b32.xlu0 %v440, 48
        %v447 = vpop.permute.xlu0 %446
        %448 = vrot.lane.b32.xlu0 %v441, 48
        %v449 = vpop.permute.xlu0 %448
        %454 = vrot.lane.b32.xlu0 %v442, 96
        %v455 = vpop.permute.xlu0 %454
        %456 = vrot.lane.b32.xlu0 %v443, 96
        %v457 = vpop.permute.xlu0 %456
        %v460 = vsel %vm435, %v438, %v447
        %v461 = vsel %vm435, %v439, %v449
        %v462 = vsel %vm403, %v460, %v455
        %v463 = vsel %vm403, %v461, %v457
        %v464 = vld [vmem:[%s4] sm:$0xff]
        %v465 = vld [vmem:[%s4 + $0x8] sm:$0xff]
        %v466 = vld [vmem:[%s4 + $0x10] sm:$0xff]
        %v467 = vld [vmem:[%s4 + $0x18] sm:$0xff]
        %v468 = vld [vmem:[%s4 + $0x20] sm:$0xff]
        %v469 = vld [vmem:[%s4 + $0x28] sm:$0xff]
        %v470 = vld [vmem:[%s4 + $0x30] sm:$0xff]
        %v471 = vld [vmem:[%s4 + $0x38] sm:$0xff]
        %v472 = vld [vmem:[%s4 + $0x40] sm:$0xff]
        %v473 = vld [vmem:[%s4 + $0x48] sm:$0xff]
        %v474 = vld [vmem:[%s4 + $0x50] sm:$0xff]
        %v475 = vld [vmem:[%s4 + $0x58] sm:$0xff]
        %v476 = vld [vmem:[%s4 + $0x60] sm:$0xff]
        %v477 = vld [vmem:[%s4 + $0x68] sm:$0xff]
        %v478 = vld [vmem:[%s4 + $0x70] sm:$0xff]
        %v479 = vld [vmem:[%s4 + $0x78] sm:$0xff]
        %v480 = vld [vmem:[%s4 + $0x80] sm:$0xff]
        %v481 = vld [vmem:[%s4 + $0x88] sm:$0xff]
        %v482 = vld [vmem:[%s5] sm:$0x1]
        %v484 = vperm.slane %v482, 0
        %v486 = vsel %vm355, %v455, 0
        %v488 = vsel %vm355, %v457, 0
        %490 = vmatpush.msra.mxu0 %v479
        %491 = vmatpush.msra.mxu0 %v478
        %492 = vmatpush.msra.mxu0 %v477
        %493 = vmatpush.msra.mxu0 %v476
        %494 = vmatpush.msra.mxu0 %v475
        %495 = vmatpush.msra.mxu0 %v474
        %496 = vmatpush.msra.mxu0 %v473
        %497 = vmatpush.msra.mxu0 %v472
        %498 = vmatpush.msra.mxu0 %v471
        %499 = vmatpush.msra.mxu0 %v470
        %500 = vmatpush.msra.mxu0 %v469
        %501 = vmatpush.msra.mxu0 %v468
        %502 = vmatpush.msra.mxu0 %v467
        %503 = vmatpush.msra.mxu0 %v466
        %504 = vmatpush.msra.mxu0 %v465
        %505 = vmatpush.msra.mxu0 %v464
        %506 = vmatmul.f32.gmra.mxu0 %v462
        %v507 = vpop.f32.mrf.mxu0
        %v508 = vadd.f32 %v484, %v507
        %509 = vmatmul.f32.gmra.mxu0 %v463
        %v510 = vpop.f32.mrf.mxu0
        %v511 = vadd.f32 %v484, %v510
        %512 = vdwg.mxu0
        %513 = vmatpush.msra.mxu0 0.0
        %514 = vmatpush.msra.mxu0 0.0
        %515 = vmatpush.msra.mxu0 0.0
        %516 = vmatpush.msra.mxu0 0.0
        %517 = vmatpush.msra.mxu0 0.0
        %518 = vmatpush.msra.mxu0 0.0
        %519 = vmatpush.msra.mxu0 0.0
        %520 = vmatpush.msra.mxu0 0.0
        %521 = vmatpush.msra.mxu0 0.0
        %522 = vmatpush.msra.mxu0 0.0
        %523 = vmatpush.msra.mxu0 0.0
        %524 = vmatpush.msra.mxu0 0.0
        %525 = vmatpush.msra.mxu0 0.0
        %526 = vmatpush.msra.mxu0 0.0
        %527 = vmatpush.msra.mxu0 %v481
        %528 = vmatpush.msra.mxu0 %v480
        %529 = vmatmul.f32.gmra.mxu0 %v486
        %v530 = vpop.f32.mrf.mxu0
        %v531 = vadd.f32 %v508, %v530
        %532 = vmatmul.f32.gmra.mxu0 %v488
        %v533 = vpop.f32.mrf.mxu0
        %v534 = vadd.f32 %v511, %v533
        %535 = vdwg.mxu0
        %v536 = vmax.f32 %v531, 0.0
        %v537 = vmax.f32 %v534, 0.0
        %538 = vst.msk [vmem:[#allocation2 + $0x8] sm:$0xff] %vm329, %v536
        %539 = vst.msk [vmem:[#allocation2 + $0x20] sm:$0xff] %vm329, %v537
        %v540 = vld [vmem:[#allocation2 + $0x7] sm:$0xff]
        %v541 = vld [vmem:[#allocation2 + $0x1f] sm:$0xff]
        %v542 = vld [vmem:[#allocation2 + $0x8] sm:$0xff]
        %v543 = vld [vmem:[#allocation2 + $0x20] sm:$0xff]
        %v544 = vld [vmem:[#allocation2 + $0x9] sm:$0xff]
        %v545 = vld [vmem:[#allocation2 + $0x21] sm:$0xff]
        %548 = vrot.lane.b32.xlu0 %v542, 64
        %v549 = vpop.permute.xlu0 %548
        %550 = vrot.lane.b32.xlu0 %v543, 64
        %v551 = vpop.permute.xlu0 %550
        %v554 = vsel %vm329, %v540, %v549
        %v555 = vsel %vm329, %v541, %v551
        %v556 = vld [vmem:[%s6] sm:$0xff]
        %v557 = vld [vmem:[%s6 + $0x8] sm:$0xff]
        %v558 = vld [vmem:[%s6 + $0x10] sm:$0xff]
        %v559 = vld [vmem:[%s6 + $0x18] sm:$0xff]
        %v560 = vld [vmem:[%s6 + $0x20] sm:$0xff]
        %v561 = vld [vmem:[%s6 + $0x28] sm:$0xff]
        %v562 = vld [vmem:[%s6 + $0x30] sm:$0xff]
        %v563 = vld [vmem:[%s6 + $0x38] sm:$0xff]
        %v564 = vld [vmem:[%s6 + $0x40] sm:$0xff]
        %v565 = vld [vmem:[%s6 + $0x48] sm:$0xff]
        %v566 = vld [vmem:[%s6 + $0x50] sm:$0xff]
        %v567 = vld [vmem:[%s6 + $0x58] sm:$0xff]
        %v568 = vld [vmem:[%s6 + $0x60] sm:$0xff]
        %v569 = vld [vmem:[%s6 + $0x68] sm:$0xff]
        %v570 = vld [vmem:[%s6 + $0x70] sm:$0xff]
        %v571 = vld [vmem:[%s6 + $0x78] sm:$0xff]
        %v572 = vld [vmem:[%s6 + $0x80] sm:$0xff]
        %v573 = vld [vmem:[%s6 + $0x88] sm:$0xff]
        %v574 = vld [vmem:[%s6 + $0x90] sm:$0xff]
        %v575 = vld [vmem:[%s6 + $0x98] sm:$0xff]
        %v576 = vld [vmem:[%s6 + $0xa0] sm:$0xff]
        %v577 = vld [vmem:[%s6 + $0xa8] sm:$0xff]
        %v578 = vld [vmem:[%s6 + $0xb0] sm:$0xff]
        %v579 = vld [vmem:[%s6 + $0xb8] sm:$0xff]
        %v580 = vld [vmem:[%s7] sm:$0x1]
        %v582 = vperm.slane %v580, 0
        %v585 = vsel %vm329, %v544, 0
        %v588 = vsel %vm329, %v545, 0
        %590 = vmatpush.msra.mxu0 %v571
        %591 = vmatpush.msra.mxu0 %v570
        %592 = vmatpush.msra.mxu0 %v569
        %593 = vmatpush.msra.mxu0 %v568
        %594 = vmatpush.msra.mxu0 %v567
        %595 = vmatpush.msra.mxu0 %v566
        %596 = vmatpush.msra.mxu0 %v565
        %597 = vmatpush.msra.mxu0 %v564
        %598 = vmatpush.msra.mxu0 %v563
        %599 = vmatpush.msra.mxu0 %v562
        %600 = vmatpush.msra.mxu0 %v561
        %601 = vmatpush.msra.mxu0 %v560
        %602 = vmatpush.msra.mxu0 %v559
        %603 = vmatpush.msra.mxu0 %v558
        %604 = vmatpush.msra.mxu0 %v557
        %605 = vmatpush.msra.mxu0 %v556
        %606 = vmatmul.f32.gmra.mxu0 %v554
        %v607 = vpop.f32.mrf.mxu0
        %v608 = vadd.f32 %v582, %v607
        %609 = vmatmul.f32.gmra.mxu0 %v555
        %v610 = vpop.f32.mrf.mxu0
        %v611 = vadd.f32 %v582, %v610
        %612 = vdwg.mxu0
        %613 = vmatpush.msra.mxu0 0.0
        %614 = vmatpush.msra.mxu0 0.0
        %615 = vmatpush.msra.mxu0 0.0
        %616 = vmatpush.msra.mxu0 0.0
        %617 = vmatpush.msra.mxu0 0.0
        %618 = vmatpush.msra.mxu0 0.0
        %619 = vmatpush.msra.mxu0 0.0
        %620 = vmatpush.msra.mxu0 0.0
        %621 = vmatpush.msra.mxu0 %v579
        %622 = vmatpush.msra.mxu0 %v578
        %623 = vmatpush.msra.mxu0 %v577
        %624 = vmatpush.msra.mxu0 %v576
        %625 = vmatpush.msra.mxu0 %v575
        %626 = vmatpush.msra.mxu0 %v574
        %627 = vmatpush.msra.mxu0 %v573
        %628 = vmatpush.msra.mxu0 %v572
        %629 = vmatmul.f32.gmra.mxu0 %v585
        %v630 = vpop.f32.mrf.mxu0
        %v631 = vadd.f32 %v608, %v630
        %632 = vmatmul.f32.gmra.mxu0 %v588
        %v633 = vpop.f32.mrf.mxu0
        %v634 = vadd.f32 %v611, %v633
        %635 = vdwg.mxu0
        %v636 = vmax.f32 %v631, 0.0
        %v637 = vmax.f32 %v634, 0.0
        %640 = vrot.lane.b32.xlu0 %v356, 32
        %v641 = vpop.permute.xlu0 %640
        %642 = vrot.lane.b32.xlu0 %v357, 32
        %v643 = vpop.permute.xlu0 %642
        %v646 = vsel %vm358, %v636, %v641
        %v647 = vsel %vm358, %v637, %v643
        %648 = vst.msk [vmem:[%s315] sm:$0xff] %vm329, %v646
        %649 = vst.msk [vmem:[%s315 + $0x8] sm:$0xff] %vm329, %v647
        %s650 = sand.u32 %s208, 1
        %s651 = scalar_lea.sflag [#allocation5], %s650
        %s652 = sand.u32 %s208, 1
        %s653 = smul.addr %s652, 16
        %s654 = scalar_lea.vmem [#allocation4], %s653
        // Predicated region
        $region53: #{tpu_custom_call.1} parent=51 // pred_check
          %p655 = pneg %p218
        $region54: #{tpu_custom_call.1} parent=51 // pred_check_branch
          %657 = sbr.rel (%p655) target = $region56
        $region55: #{tpu_custom_call.1} parent=51 // pred_region
          %s658 = smul.u32 2, %s22
          %660 = vsyncadd %s651, 0
          %s661 = smul.addr %s658, 8
          %s662 = scalar_lea.hbm %s8, %s661
          %s663 = sshll.u32 %s654, 4
          %s664 = int_to_ptr.vmem [resolvable:$true] %s663
          %s665 = sshll.u32 %s662, 4
          %s666 = int_to_ptr.hbm [resolvable:$true] %s665
          %671 = dma.vmem_to_hbm [thread:$0]  %s664, 256, %s666, %s651, 128, 128, 8
        $region56: #{tpu_custom_call.1} parent=51 // pred_fallthru
          _
      $region52: #{tpu_custom_call.1} parent=5 // pred_fallthru
        _
      %p672 = scmp.le.s32.totalorder 2, %s17
      // Predicated region
      $region57: #{tpu_custom_call.1} parent=5 // pred_check
        %p673 = pneg %p672
      $region58: #{tpu_custom_call.1} parent=5 // pred_check_branch
        %675 = sbr.rel (%p673) target = $region60
      $region59: #{tpu_custom_call.1} parent=5 // pred_region
        %s676 = ssub.s32 %s17, 2
        // Predicated region
        $region61: #{tpu_custom_call.1} parent=59 // pred_check
          %p677 = pneg %p224
        $region62: #{tpu_custom_call.1} parent=59 // pred_check_branch
          %679 = sbr.rel (%p677) target = $region64
        $region63: #{tpu_custom_call.1} parent=59 // pred_region
          %s680 = sand.u32 %s209, 1
          %s681 = scalar_lea.sflag [#allocation5], %s680
          %s682 = sand.u32 %s209, 1
          %s683 = smul.addr %s682, 16
          %s684 = scalar_lea.vmem [#allocation4], %s683
          %686 = dma.done %s681, 256
        $region64: #{tpu_custom_call.1} parent=59 // pred_fallthru
          _
      $region60: #{tpu_custom_call.1} parent=5 // pred_fallthru
        _
    $region6: #{tpu_custom_call.1} parent=1 // loop_footer
      %s21 = sadd.s32 1, %s17
    $region7: #{tpu_custom_call.1} parent=1 // loop_footer_branch
      %16 = sbr.rel target = $region3
    $region8: #{tpu_custom_call.1} parent=1 // loop_exit
      _
    %687 = vsyncpa [#allocation5], 1
    %s688 = scalar_lea.sflag [#allocation5], 1
    %689 = vsyncpa %s688, 1

</llo_original>
